<compile_context>
chip_gen: v6e
topology: v6e:2x2x1
jax: 0.10.0
libtpu: 0.0.40
codegen_flags: <defaults>
</compile_context>

<pallas_src>
import math

import jax
import jax.numpy as jnp
from jax.experimental import pallas as pl
from jax.experimental.pallas import tpu as pltpu

LANE = 128  # TPU lane width: pad feature dims to multiples of this.
VMEM_LIMIT = 32 * 1024 * 1024  # safe scoped-VMEM limit on v5e/v6e/v7x


def _round_up(v, m):
    return ((v + m - 1) // m) * m


def _pad2(x, rows, cols):
    r, c = x.shape
    if (r, c) == (rows, cols):
        return x
    return jnp.pad(x, ((0, rows - r), (0, cols - c)))


def _pad1(x, n):
    if x.shape[0] == n:
        return x
    return jnp.pad(x, (0, n - x.shape[0]))


# --------------------------------------------------------------------------- #
# Kernel 1: hoisted projection  proj = X @ W_neigh  (bf16 out)                  #
# --------------------------------------------------------------------------- #
def _project_kernel(x_ref, w_ref, o_ref):
    o_ref[...] = jnp.dot(x_ref[...], w_ref[...],
                         preferred_element_type=jnp.float32).astype(o_ref.dtype)


def project(x, w, *, tm):
    n, f_in = x.shape
    f_out = w.shape[1]
    assert n % tm == 0
    cost = pl.CostEstimate(
        flops=2 * n * f_in * f_out,
        transcendentals=0,
        bytes_accessed=int(x.size * 2 + w.size * 2 + n * f_out * 2),
    )
    return pl.pallas_call(
        _project_kernel,
        out_shape=jax.ShapeDtypeStruct((n, f_out), jnp.bfloat16),
        grid_spec=pltpu.PrefetchScalarGridSpec(
            num_scalar_prefetch=0,
            grid=(n // tm,),
            in_specs=[
                pl.BlockSpec((tm, f_in), lambda i: (i, 0)),
                pl.BlockSpec((f_in, f_out), lambda i: (0, 0)),
            ],
            out_specs=pl.BlockSpec((tm, f_out), lambda i: (i, 0)),
        ),
        compiler_params=pltpu.CompilerParams(
            dimension_semantics=("parallel",),
            vmem_limit_bytes=VMEM_LIMIT,
        ),
        cost_estimate=cost,
    )(x, w)


# --------------------------------------------------------------------------- #
# Kernel 2: layer-1 aggregation + fused epilogue producing layer-2 inputs.     #
#   acc   = sum_k A[i,k] @ proj1[k]                       (hot loop, bf16 MXU)  #
#   h     = relu(X[i] @ W1_self + acc + b1)               (finalize)            #
#   proj2 = h @ W2_neigh (bf16 out);  self2 = h @ W2_self + b2 (f32 out)        #
# --------------------------------------------------------------------------- #
def _layer1_kernel(a_ref, p1_ref, xi_ref, w1s_ref, b1_ref, w2n_ref, w2s_ref,
                   b2_ref, p2_ref, s2_ref, acc_ref):
    k = pl.program_id(1)

    @pl.when(k == 0)
    def _init():
        acc_ref[...] = jnp.zeros_like(acc_ref)

    # Hot loop: a single bf16 MXU matmul per tile (proj1 is precomputed, so no
    # redundant X @ W_neigh work rides the critical MXU path).
    acc_ref[...] += jnp.dot(a_ref[...], p1_ref[...],
                            preferred_element_type=jnp.float32)

    @pl.when(k == pl.num_programs(1) - 1)
    def _finalize():
        h = (jnp.dot(xi_ref[...], w1s_ref[...],
                     preferred_element_type=jnp.float32)
             + acc_ref[...] + b1_ref[...])
        # ReLU; F.dropout(p=0.01, training=False) is the identity.
        h = jnp.maximum(h, 0.0).astype(jnp.bfloat16)
        # Fused layer-2 prologue (bf16 operands only on the MXU; f32 acc).
        p2_ref[...] = jnp.dot(h, w2n_ref[...],
                              preferred_element_type=jnp.float32
                              ).astype(p2_ref.dtype)
        s2_ref[...] = (jnp.dot(h, w2s_ref[...],
                               preferred_element_type=jnp.float32)
                       + b2_ref[...]).astype(s2_ref.dtype)


def sage_layer1(a, proj1, x, w1s, b1, w2n, w2s, b2, *, tm, tk):
    n = a.shape[0]
    in_p = x.shape[1]
    hid_p = w1s.shape[1]
    out_p = w2n.shape[1]
    assert n % tm == 0 and n % tk == 0
    grid = (n // tm, n // tk)
    b1_2d = b1.reshape(1, hid_p).astype(jnp.float32)
    b2_2d = b2.reshape(1, out_p).astype(jnp.float32)

    cost = pl.CostEstimate(
        flops=2 * n * n * hid_p           # A @ proj1
        + 2 * n * in_p * hid_p            # self term
        + 4 * n * hid_p * out_p,          # proj2 + self2 epilogue
        transcendentals=0,
        bytes_accessed=int(a.size * 2
                           + proj1.size * 2 * grid[0]   # re-streamed per row tile
                           + x.size * 2
                           + (w1s.size + w2n.size + w2s.size) * 2
                           + n * out_p * (2 + 4)),
    )

    return pl.pallas_call(
        _layer1_kernel,
        out_shape=(jax.ShapeDtypeStruct((n, out_p), jnp.bfloat16),   # proj2
                   jax.ShapeDtypeStruct((n, out_p), jnp.float32)),   # self2
        grid_spec=pltpu.PrefetchScalarGridSpec(
            num_scalar_prefetch=0,
            grid=grid,
            in_specs=[
                pl.BlockSpec((tm, tk), lambda i, k: (i, k)),        # A_norm tile
                pl.BlockSpec((tk, hid_p), lambda i, k: (k, 0)),     # proj1 src rows
                pl.BlockSpec((tm, in_p), lambda i, k: (i, 0)),      # X dst rows
                pl.BlockSpec((in_p, hid_p), lambda i, k: (0, 0)),   # W1_self
                pl.BlockSpec((1, hid_p), lambda i, k: (0, 0)),      # b1
                pl.BlockSpec((hid_p, out_p), lambda i, k: (0, 0)),  # W2_neigh
                pl.BlockSpec((hid_p, out_p), lambda i, k: (0, 0)),  # W2_self
                pl.BlockSpec((1, out_p), lambda i, k: (0, 0)),      # b2
            ],
            out_specs=(pl.BlockSpec((tm, out_p), lambda i, k: (i, 0)),
                       pl.BlockSpec((tm, out_p), lambda i, k: (i, 0))),
            scratch_shapes=[pltpu.VMEM((tm, hid_p), jnp.float32)],
        ),
        compiler_params=pltpu.CompilerParams(
            dimension_semantics=("parallel", "arbitrary"),
            vmem_limit_bytes=VMEM_LIMIT,
        ),
        cost_estimate=cost,
    )(a, proj1, x, w1s, b1_2d, w2n, w2s, b2_2d)


# --------------------------------------------------------------------------- #
# Kernel 3: layer-2 aggregation.  out = sum_k A[i,k] @ proj2[k]  + self2[i]     #
# --------------------------------------------------------------------------- #
def _layer2_kernel(a_ref, p2_ref, s2_ref, o_ref, acc_ref):
    k = pl.program_id(1)

    @pl.when(k == 0)
    def _init():
        acc_ref[...] = jnp.zeros_like(acc_ref)

    acc_ref[...] += jnp.dot(a_ref[...], p2_ref[...],
                            preferred_element_type=jnp.float32)

    @pl.when(k == pl.num_programs(1) - 1)
    def _finalize():
        o_ref[...] = (acc_ref[...] + s2_ref[...]).astype(o_ref.dtype)


def sage_layer2(a, proj2, self2, *, tm, tk):
    n = a.shape[0]
    out_p = proj2.shape[1]
    assert n % tm == 0 and n % tk == 0
    grid = (n // tm, n // tk)
    cost = pl.CostEstimate(
        flops=2 * n * n * out_p,
        transcendentals=0,
        bytes_accessed=int(a.size * 2
                           + proj2.size * 2 * grid[0]
                           + self2.size * 4
                           + n * out_p * 4),
    )
    return pl.pallas_call(
        _layer2_kernel,
        out_shape=jax.ShapeDtypeStruct((n, out_p), jnp.float32),
        grid_spec=pltpu.PrefetchScalarGridSpec(
            num_scalar_prefetch=0,
            grid=grid,
            in_specs=[
                pl.BlockSpec((tm, tk), lambda i, k: (i, k)),      # A_norm tile
                pl.BlockSpec((tk, out_p), lambda i, k: (k, 0)),   # proj2 src rows
                pl.BlockSpec((tm, out_p), lambda i, k: (i, 0)),   # self2 dst rows
            ],
            out_specs=pl.BlockSpec((tm, out_p), lambda i, k: (i, 0)),
            scratch_shapes=[pltpu.VMEM((tm, out_p), jnp.float32)],
        ),
        compiler_params=pltpu.CompilerParams(
            dimension_semantics=("parallel", "arbitrary"),
            vmem_limit_bytes=VMEM_LIMIT,
        ),
        cost_estimate=cost,
    )(a, proj2, self2)


# --------------------------------------------------------------------------- #
# Forward pass: conv1 -> ReLU -> dropout(training=False) -> conv2.             #
# --------------------------------------------------------------------------- #
def graphsage_forward(a_norm, features, params, *, tm=None, tk=None):
    n, in_f = features.shape
    hid_f = params["w1_self"].shape[1]
    out_f = params["w2_self"].shape[1]

    # Tile selection: 512 reaches ~85% of HBM roofline and cuts the proj/X
    # re-stream (∝ 1/tm) 4x vs 128; tk >= 256 fills the 256-wide v6e/v7x MXU
    # K-dim.  Clamp for small graphs so padding stays modest.
    auto = min(512, max(256, _round_up(n, 256)))
    tm = tm or auto
    tk = tk or auto
    # v7x megacore: keep the 'parallel' dst-row grid dim >= 2 when possible so
    # both TensorCores get work (no effect on single-TC v5e/v6e correctness).
    while tm > 256 and _round_up(n, tm) // tm < 2:
        tm //= 2

    n_pad = _round_up(n, math.lcm(tm, tk))
    in_p = _round_up(in_f, LANE)
    hid_p = _round_up(hid_f, LANE)
    out_p = _round_up(out_f, LANE)

    a_p = _pad2(a_norm, n_pad, n_pad).astype(jnp.bfloat16)
    x_p = _pad2(features, n_pad, in_p).astype(jnp.bfloat16)

    w1s = _pad2(params["w1_self"], in_p, hid_p).astype(jnp.bfloat16)
    w1n = _pad2(params["w1_neigh"], in_p, hid_p).astype(jnp.bfloat16)
    b1 = _pad1(params["b1"], hid_p).astype(jnp.float32)
    w2s = _pad2(params["w2_self"], hid_p, out_p).astype(jnp.bfloat16)
    w2n = _pad2(params["w2_neigh"], hid_p, out_p).astype(jnp.bfloat16)
    b2 = _pad1(params["b2"], out_p).astype(jnp.float32)

    # Hoisted projection for layer 1 (computed exactly once).
    proj1 = project(x_p, w1n, tm=tm)
    # Layer-1 aggregation with fused layer-2 prologue: h never hits HBM.
    proj2, self2 = sage_layer1(a_p, proj1, x_p, w1s, b1, w2n, w2s, b2,
                               tm=tm, tk=tk)
    # Layer-2 aggregation.
    out = sage_layer2(a_p, proj2, self2, tm=tm, tk=tk)
    return out[:n, :out_f]


def _reference_forward(a_norm, features, params):
    """Pure-JAX reference mirroring the kernels' bf16 operand rounding and the
    project-first association A @ (X @ W_neigh), with f32 accumulation."""
    f32 = jnp.float32
    rnd = lambda t: t.astype(jnp.bfloat16).astype(f32)  # bf16 operand rounding
    a = rnd(a_norm)

    def layer(x, ws, wn, b):
        proj = rnd(x @ rnd(wn))         # kernels store proj in bf16
        return x @ rnd(ws) + a @ proj + b

    h = jnp.maximum(
        layer(rnd(features), params["w1_self"], params["w1_neigh"], params["b1"]),
        0.0)
    h = rnd(h)  # kernels carry h as bf16 into layer 2
    return layer(h, params["w2_self"], params["w2_neigh"], params["b2"])


if __name__ == "__main__":
    # Small shapes: N nodes (not a tile multiple, to exercise padding).
    N, IN_FEATS, HID_FEATS, OUT_FEATS = 200, 16, 160, 8

    key = jax.random.PRNGKey(0)
    k_feat, k_adj, k1s, k1n, kb1, k2s, k2n, kb2 = jax.random.split(key, 8)

    features = jax.random.normal(k_feat, (N, IN_FEATS), dtype=jnp.float32)

    # Deterministic random graph -> dense adjacency A[dst, src], row-normalized
    # so A_norm @ X is the mean over in-neighbors (zero-degree rows -> 0).
    adj = (jax.random.uniform(k_adj, (N, N)) < 0.3).astype(jnp.float32)
    adj = adj * (1.0 - jnp.eye(N, dtype=jnp.float32))  # no self loops
    deg = adj.sum(axis=1, keepdims=True)
    a_norm = adj / jnp.maximum(deg, 1.0)

    # Deterministic parameters (shapes per dglnn.SAGEConv(in, out, 'mean')).
    s1 = 1.0 / jnp.sqrt(jnp.float32(IN_FEATS))
    s2 = 1.0 / jnp.sqrt(jnp.float32(HID_FEATS))
    params = {
        "w1_self":  s1 * jax.random.normal(k1s, (IN_FEATS, HID_FEATS), jnp.float32),
        "w1_neigh": s1 * jax.random.normal(k1n, (IN_FEATS, HID_FEATS), jnp.float32),
        "b1":       0.1 * jax.random.normal(kb1, (HID_FEATS,), jnp.float32),
        "w2_self":  s2 * jax.random.normal(k2s, (HID_FEATS, OUT_FEATS), jnp.float32),
        "w2_neigh": s2 * jax.random.normal(k2n, (HID_FEATS, OUT_FEATS), jnp.float32),
        "b2":       0.1 * jax.random.normal(kb2, (OUT_FEATS,), jnp.float32),
    }

    out = jax.block_until_ready(graphsage_forward(a_norm, features, params))
    ref = _reference_forward(a_norm, features, params)

    assert out.shape == (N, OUT_FEATS), out.shape
    max_err = float(jnp.max(jnp.abs(out - ref)))
    assert jnp.allclose(out, ref, atol=2e-2, rtol=2e-2), f"max abs err {max_err}"

    print("KERNEL_OK")
</pallas_src>

<mosaic_0001>
module attributes {stable_mosaic.version = 11 : i64} {
  func.func @_project_kernel(%arg0: i32, %arg1: memref<256x128xbf16, #tpu.memory_space<vmem>>, %arg2: memref<128x256xbf16, #tpu.memory_space<vmem>>, %arg3: memref<256x256xbf16, #tpu.memory_space<vmem>>) attributes {dimension_semantics = [#tpu.dimension_semantics<parallel>], iteration_bounds = array<i64: 1>, scalar_prefetch = 0 : i64, scratch_operands = 0 : i64, tpu.core_type = #tpu.core_type<tc>, window_params = [{transform_indices = @transform_0, window_bounds = array<i64: 256, 128>}, {pipeline_mode = #tpu.pipeline_mode<synchronous>, transform_indices = @transform_1, window_bounds = array<i64: 128, 256>}, {transform_indices = @transform_2, window_bounds = array<i64: 256, 256>}]} {
    %c0 = arith.constant 0 : index
    %c0_0 = arith.constant 0 : index
    %0 = vector.load %arg1[%c0, %c0_0] : memref<256x128xbf16, #tpu.memory_space<vmem>>, vector<256x128xbf16>
    %c0_1 = arith.constant 0 : index
    %c0_2 = arith.constant 0 : index
    %1 = vector.load %arg2[%c0_1, %c0_2] : memref<128x256xbf16, #tpu.memory_space<vmem>>, vector<128x256xbf16>
    %cst = arith.constant dense<0.000000e+00> : vector<256x256xf32>
    %2 = tpu.matmul %0, %1, %cst {dimension_numbers = #tpu.dot_dimension_numbers<[1], [0], [0], [1], [0, 0, 1, 1], [], []>} : vector<256x128xbf16>, vector<128x256xbf16>, vector<256x256xf32> -> vector<256x256xf32>
    %3 = arith.truncf %2 : vector<256x256xf32> to vector<256x256xbf16>
    %c0_3 = arith.constant 0 : index
    %c0_4 = arith.constant 0 : index
    %4 = vector.load %arg3[%c0_3, %c0_4] : memref<256x256xbf16, #tpu.memory_space<vmem>>, vector<256x256xbf16>
    tpu.vector_store %arg3[%c0_3, %c0_4], %3 {strides = array<i32>} : memref<256x256xbf16, #tpu.memory_space<vmem>>, vector<256x256xbf16>,
    return
  }
  func.func @transform_0(%arg0: i32) -> (i32, i32) {
    %c0_i32 = arith.constant 0 : i32
    %c0_i32_0 = arith.constant 0 : i32
    return %arg0, %c0_i32 : i32, i32
  }
  func.func @transform_1(%arg0: i32) -> (i32, i32) {
    %c0_i32 = arith.constant 0 : i32
    %c0_i32_0 = arith.constant 0 : i32
    %c0_i32_1 = arith.constant 0 : i32
    return %c0_i32, %c0_i32_0 : i32, i32
  }
  func.func @transform_2(%arg0: i32) -> (i32, i32) {
    %c0_i32 = arith.constant 0 : i32
    %c0_i32_0 = arith.constant 0 : i32
    return %arg0, %c0_i32 : i32, i32
  }
}

</mosaic_0001>

<llo_original>
// kernel: tpu_custom_call.1
$region0: #{tpu_custom_call.1}
  #allocation0 [shape = 'u32[]', space=smem, size = 0x4, offset = 0x4, fixed_abs, tag = 'smem constant byte address 0x4 - core index']
  #allocation1 [shape = 'u32[144,128]{1,0:T(1,128)}', space=vmem, size = 0x12000, scoped, tag = 'internal scratch']
  %s0 = inlined_call_operand.hbm [shape: bf16[256,128], index: 0, kind: input, shape index: {}]
  %s1 = inlined_call_operand.hbm [shape: bf16[128,256], index: 1, kind: input, shape index: {}]
  %s2 = inlined_call_operand.hbm [shape: bf16[256,256], index: 2, kind: output, shape index: {}]
  %s3 = sld [smem:[#allocation0]]
  $region26: #{tpu_custom_call.1} parent=0
    _
  %s5 = ssub.s32 1, %s3
  %s6 = scalar_select 0, %s5, %s3
  $region1: #{tpu_custom_call.1} parent=0
    #allocation2 [shape = 'u8[65536]{0}', space=vmem, size = 0x10000, scoped, tag = 'input window, operand 0, single buffered']
    #allocation3 [shape = 's32[1]{0}', space=sflag, size = 0x4, scoped, tag = 'scoped memory for tpu_custom_call.1']
    #allocation4 [shape = 's32[1]{0}', space=sflag, size = 0x4, scoped, tag = 'scoped memory for tpu_custom_call.1']
    #allocation5 [shape = 'u8[65536]{0}', space=vmem, size = 0x10000, scoped, tag = 'input window, operand 1, single buffered']
    #allocation6 [shape = 's32[1]{0}', space=sflag, size = 0x4, scoped, tag = 'scoped memory for tpu_custom_call.1']
    #allocation7 [shape = 'u8[131072]{0}', space=vmem, size = 0x20000, scoped, tag = 'output window, operand 0, single buffered']
    %7 = vsyncpa [#allocation3], 0
    %8 = vsyncpa [#allocation6], 0
    %9 = vsyncpa [#allocation4], 0
    // Predicated region
    $region2: #{tpu_custom_call.1} parent=1 // pred_check
      _
    $region3: #{tpu_custom_call.1} parent=1 // pred_check_branch
      %11 = sbr.rel (0) target = $region5
    $region4: #{tpu_custom_call.1} parent=1 // pred_region
      %s13 = ssub.s32 2048, 2048
      %14 = vsyncadd [#allocation3], %s13
      %s15 = sshll.u32 [#allocation2], 4
      %s16 = int_to_ptr.vmem [resolvable:$true] %s15
      %21 = dma.hbm_to_vmem [thread:$0]  %s0, 2048, %s16, [#allocation3], 64, 64, 4
    $region5: #{tpu_custom_call.1} parent=1 // pred_fallthru
      _
    // Predicated region
    $region6: #{tpu_custom_call.1} parent=1 // pred_check
      _
    $region7: #{tpu_custom_call.1} parent=1 // pred_check_branch
      %23 = sbr.rel (0) target = $region9
    $region8: #{tpu_custom_call.1} parent=1 // pred_region
      %s25 = ssub.s32 2048, 2048
      %26 = vsyncadd [#allocation6], %s25
      %s27 = sshll.u32 [#allocation5], 4
      %s28 = int_to_ptr.vmem [resolvable:$true] %s27
      %33 = dma.hbm_to_vmem [thread:$0]  %s1, 2048, %s28, [#allocation6], 128, 128, 8
    $region9: #{tpu_custom_call.1} parent=1 // pred_fallthru
      _
    // Predicated region
    $region10: #{tpu_custom_call.1} parent=1 // pred_check
      _
    $region11: #{tpu_custom_call.1} parent=1 // pred_check_branch
      %35 = sbr.rel (0) target = $region13
    $region12: #{tpu_custom_call.1} parent=1 // pred_region
      %36 = dma.done [#allocation3], 2048
    $region13: #{tpu_custom_call.1} parent=1 // pred_fallthru
      _
    // Predicated region
    $region14: #{tpu_custom_call.1} parent=1 // pred_check
      _
    $region15: #{tpu_custom_call.1} parent=1 // pred_check_branch
      %38 = sbr.rel (0) target = $region17
    $region16: #{tpu_custom_call.1} parent=1 // pred_region
      %39 = dma.done [#allocation6], 2048
    $region17: #{tpu_custom_call.1} parent=1 // pred_fallthru
      _
    %v41 = vld [vmem:[#allocation2] sm:$0xf]
    %v42 = vld [vmem:[#allocation2 + $0x4] sm:$0xf]
    %v43 = vld [vmem:[#allocation2 + $0x8] sm:$0xf]
    %v44 = vld [vmem:[#allocation2 + $0xc] sm:$0xf]
    %v45 = vld [vmem:[#allocation2 + $0x10] sm:$0xf]
    %v46 = vld [vmem:[#allocation2 + $0x14] sm:$0xf]
    %v47 = vld [vmem:[#allocation2 + $0x18] sm:$0xf]
    %v48 = vld [vmem:[#allocation2 + $0x1c] sm:$0xf]
    %v49 = vld [vmem:[#allocation2 + $0x20] sm:$0xf]
    %v50 = vld [vmem:[#allocation2 + $0x24] sm:$0xf]
    %v51 = vld [vmem:[#allocation2 + $0x28] sm:$0xf]
    %v52 = vld [vmem:[#allocation2 + $0x2c] sm:$0xf]
    %v53 = vld [vmem:[#allocation2 + $0x30] sm:$0xf]
    %v54 = vld [vmem:[#allocation2 + $0x34] sm:$0xf]
    %v55 = vld [vmem:[#allocation2 + $0x38] sm:$0xf]
    %v56 = vld [vmem:[#allocation2 + $0x3c] sm:$0xf]
    %v57 = vld [vmem:[#allocation2 + $0x40] sm:$0xf]
    %v58 = vld [vmem:[#allocation2 + $0x44] sm:$0xf]
    %v59 = vld [vmem:[#allocation2 + $0x48] sm:$0xf]
    %v60 = vld [vmem:[#allocation2 + $0x4c] sm:$0xf]
    %v61 = vld [vmem:[#allocation2 + $0x50] sm:$0xf]
    %v62 = vld [vmem:[#allocation2 + $0x54] sm:$0xf]
    %v63 = vld [vmem:[#allocation2 + $0x58] sm:$0xf]
    %v64 = vld [vmem:[#allocation2 + $0x5c] sm:$0xf]
    %v65 = vld [vmem:[#allocation2 + $0x60] sm:$0xf]
    %v66 = vld [vmem:[#allocation2 + $0x64] sm:$0xf]
    %v67 = vld [vmem:[#allocation2 + $0x68] sm:$0xf]
    %v68 = vld [vmem:[#allocation2 + $0x6c] sm:$0xf]
    %v69 = vld [vmem:[#allocation2 + $0x70] sm:$0xf]
    %v70 = vld [vmem:[#allocation2 + $0x74] sm:$0xf]
    %v71 = vld [vmem:[#allocation2 + $0x78] sm:$0xf]
    %v72 = vld [vmem:[#allocation2 + $0x7c] sm:$0xf]
    %v73 = vld [vmem:[#allocation5] sm:$0xff]
    %v74 = vld [vmem:[#allocation5 + $0x8] sm:$0xff]
    %v75 = vld [vmem:[#allocation5 + $0x10] sm:$0xff]
    %v76 = vld [vmem:[#allocation5 + $0x18] sm:$0xff]
    %v77 = vld [vmem:[#allocation5 + $0x20] sm:$0xff]
    %v78 = vld [vmem:[#allocation5 + $0x28] sm:$0xff]
    %v79 = vld [vmem:[#allocation5 + $0x30] sm:$0xff]
    %v80 = vld [vmem:[#allocation5 + $0x38] sm:$0xff]
    %v81 = vld [vmem:[#allocation5 + $0x40] sm:$0xff]
    %v82 = vld [vmem:[#allocation5 + $0x48] sm:$0xff]
    %v83 = vld [vmem:[#allocation5 + $0x50] sm:$0xff]
    %v84 = vld [vmem:[#allocation5 + $0x58] sm:$0xff]
    %v85 = vld [vmem:[#allocation5 + $0x60] sm:$0xff]
    %v86 = vld [vmem:[#allocation5 + $0x68] sm:$0xff]
    %v87 = vld [vmem:[#allocation5 + $0x70] sm:$0xff]
    %v88 = vld [vmem:[#allocation5 + $0x78] sm:$0xff]
    %v121 = vunpack.c.l.b16 %v41
    %v122 = vunpack.c.l.b16 %v42
    %v123 = vunpack.c.l.b16 %v43
    %v124 = vunpack.c.l.b16 %v44
    %v125 = vunpack.c.l.b16 %v45
    %v126 = vunpack.c.l.b16 %v46
    %v127 = vunpack.c.l.b16 %v47
    %v128 = vunpack.c.l.b16 %v48
    %v129 = vunpack.c.l.b16 %v49
    %v130 = vunpack.c.l.b16 %v50
    %v131 = vunpack.c.l.b16 %v51
    %v132 = vunpack.c.l.b16 %v52
    %v133 = vunpack.c.l.b16 %v53
    %v134 = vunpack.c.l.b16 %v54
    %v135 = vunpack.c.l.b16 %v55
    %v136 = vunpack.c.l.b16 %v56
    %v137 = vunpack.c.l.b16 %v57
    %v138 = vunpack.c.l.b16 %v58
    %v139 = vunpack.c.l.b16 %v59
    %v140 = vunpack.c.l.b16 %v60
    %v141 = vunpack.c.l.b16 %v61
    %v142 = vunpack.c.l.b16 %v62
    %v143 = vunpack.c.l.b16 %v63
    %v144 = vunpack.c.l.b16 %v64
    %v145 = vunpack.c.l.b16 %v65
    %v146 = vunpack.c.l.b16 %v66
    %v147 = vunpack.c.l.b16 %v67
    %v148 = vunpack.c.l.b16 %v68
    %v149 = vunpack.c.l.b16 %v69
    %v150 = vunpack.c.l.b16 %v70
    %v151 = vunpack.c.l.b16 %v71
    %v152 = vunpack.c.l.b16 %v72
    %v153 = vpack.c.b16 %v122, %v121
    %v154 = vpack.c.b16 %v124, %v123
    %v155 = vpack.c.b16 %v126, %v125
    %v156 = vpack.c.b16 %v128, %v127
    %v157 = vpack.c.b16 %v130, %v129
    %v158 = vpack.c.b16 %v132, %v131
    %v159 = vpack.c.b16 %v134, %v133
    %v160 = vpack.c.b16 %v136, %v135
    %v161 = vpack.c.b16 %v138, %v137
    %v162 = vpack.c.b16 %v140, %v139
    %v163 = vpack.c.b16 %v142, %v141
    %v164 = vpack.c.b16 %v144, %v143
    %v165 = vpack.c.b16 %v146, %v145
    %v166 = vpack.c.b16 %v148, %v147
    %v167 = vpack.c.b16 %v150, %v149
    %v168 = vpack.c.b16 %v152, %v151
    %v201 = vunpack.c.l.b16 %v73
    %v202 = vunpack.c.h.b16 %v73
    %v203 = vunpack.c.l.b16 %v74
    %v204 = vunpack.c.h.b16 %v74
    %v205 = vunpack.c.l.b16 %v75
    %v206 = vunpack.c.h.b16 %v75
    %v207 = vunpack.c.l.b16 %v76
    %v208 = vunpack.c.h.b16 %v76
    %v209 = vunpack.c.l.b16 %v77
    %v210 = vunpack.c.h.b16 %v77
    %v211 = vunpack.c.l.b16 %v78
    %v212 = vunpack.c.h.b16 %v78
    %v213 = vunpack.c.l.b16 %v79
    %v214 = vunpack.c.h.b16 %v79
    %v215 = vunpack.c.l.b16 %v80
    %v216 = vunpack.c.h.b16 %v80
    %v217 = vunpack.c.l.b16 %v81
    %v218 = vunpack.c.h.b16 %v81
    %v219 = vunpack.c.l.b16 %v82
    %v220 = vunpack.c.h.b16 %v82
    %v221 = vunpack.c.l.b16 %v83
    %v222 = vunpack.c.h.b16 %v83
    %v223 = vunpack.c.l.b16 %v84
    %v224 = vunpack.c.h.b16 %v84
    %v225 = vunpack.c.l.b16 %v85
    %v226 = vunpack.c.h.b16 %v85
    %v227 = vunpack.c.l.b16 %v86
    %v228 = vunpack.c.h.b16 %v86
    %v229 = vunpack.c.l.b16 %v87
    %v230 = vunpack.c.h.b16 %v87
    %v231 = vunpack.c.l.b16 %v88
    %v232 = vunpack.c.h.b16 %v88
    %v233 = vpack.c.b16 %v203, %v201
    %v234 = vpack.c.b16 %v204, %v202
    %v235 = vpack.c.b16 %v207, %v205
    %v236 = vpack.c.b16 %v208, %v206
    %v237 = vpack.c.b16 %v211, %v209
    %v238 = vpack.c.b16 %v212, %v210
    %v239 = vpack.c.b16 %v215, %v213
    %v240 = vpack.c.b16 %v216, %v214
    %v241 = vpack.c.b16 %v219, %v217
    %v242 = vpack.c.b16 %v220, %v218
    %v243 = vpack.c.b16 %v223, %v221
    %v244 = vpack.c.b16 %v224, %v222
    %v245 = vpack.c.b16 %v227, %v225
    %v246 = vpack.c.b16 %v228, %v226
    %v247 = vpack.c.b16 %v231, %v229
    %v248 = vpack.c.b16 %v232, %v230
    %265 = vmatprep.subr.bf16.mxu0 %v248
    %266 = vmatpush1.bf16.msra.mxu0 %v247
    %267 = vmatprep.subr.bf16.mxu0 %v246
    %268 = vmatpush1.bf16.msra.mxu0 %v245
    %269 = vmatprep.subr.bf16.mxu0 %v244
    %270 = vmatpush1.bf16.msra.mxu0 %v243
    %271 = vmatprep.subr.bf16.mxu0 %v242
    %272 = vmatpush1.bf16.msra.mxu0 %v241
    %273 = vmatprep.subr.bf16.mxu0 %v240
    %274 = vmatpush1.bf16.msra.mxu0 %v239
    %275 = vmatprep.subr.bf16.mxu0 %v238
    %276 = vmatpush1.bf16.msra.mxu0 %v237
    %277 = vmatprep.subr.bf16.mxu0 %v236
    %278 = vmatpush1.bf16.msra.mxu0 %v235
    %279 = vmatprep.subr.bf16.mxu0 %v234
    %280 = vmatpush1.bf16.msra.mxu0 %v233
    %281 = vmatprep.subr.bf16.mxu0 0
    %282 = vmatpush2.bf16.msra.mxu0 0
    %283 = vmatprep.subr.bf16.mxu0 0
    %284 = vmatpush2.bf16.msra.mxu0 0
    %285 = vmatprep.subr.bf16.mxu0 0
    %286 = vmatpush2.bf16.msra.mxu0 0
    %287 = vmatprep.subr.bf16.mxu0 0
    %288 = vmatpush2.bf16.msra.mxu0 0
    %289 = vmatprep.subr.bf16.mxu0 0
    %290 = vmatpush2.bf16.msra.mxu0 0
    %291 = vmatprep.subr.bf16.mxu0 0
    %292 = vmatpush2.bf16.msra.mxu0 0
    %293 = vmatprep.subr.bf16.mxu0 0
    %294 = vmatpush2.bf16.msra.mxu0 0
    %295 = vmatprep.subr.bf16.mxu0 0
    %296 = vmatpush2.bf16.msra.mxu0 0
    %297 = vmatprep.mubr.bf16.mxu0 0
    %298 = vmatmul.mubr.bf16.gmra.mxu0 %v153
    %v299 = vpop.f32.mrf.mxu0
    %v300 = vadd.f32 0.0, %v299
    %v301 = vpop.f32.mrf.mxu0
    %v302 = vadd.f32 0.0, %v301
    %v303 = vpop.f32.mrf.mxu0
    %v304 = vadd.f32 0.0, %v303
    %v305 = vpop.f32.mrf.mxu0
    %v306 = vadd.f32 0.0, %v305
    %307 = vmatprep.mubr.bf16.mxu0 0
    %308 = vmatmul.mubr.bf16.gmra.mxu0 %v154
    %v309 = vpop.f32.mrf.mxu0
    %v310 = vadd.f32 0.0, %v309
    %v311 = vpop.f32.mrf.mxu0
    %v312 = vadd.f32 0.0, %v311
    %v313 = vpop.f32.mrf.mxu0
    %v314 = vadd.f32 0.0, %v313
    %v315 = vpop.f32.mrf.mxu0
    %v316 = vadd.f32 0.0, %v315
    %317 = vmatprep.mubr.bf16.mxu0 0
    %318 = vmatmul.mubr.bf16.gmra.mxu0 %v155
    %v319 = vpop.f32.mrf.mxu0
    %v320 = vadd.f32 0.0, %v319
    %v321 = vpop.f32.mrf.mxu0
    %v322 = vadd.f32 0.0, %v321
    %v323 = vpop.f32.mrf.mxu0
    %v324 = vadd.f32 0.0, %v323
    %v325 = vpop.f32.mrf.mxu0
    %v326 = vadd.f32 0.0, %v325
    %327 = vmatprep.mubr.bf16.mxu0 0
    %328 = vmatmul.mubr.bf16.gmra.mxu0 %v156
    %v329 = vpop.f32.mrf.mxu0
    %v330 = vadd.f32 0.0, %v329
    %v331 = vpop.f32.mrf.mxu0
    %v332 = vadd.f32 0.0, %v331
    %v333 = vpop.f32.mrf.mxu0
    %v334 = vadd.f32 0.0, %v333
    %v335 = vpop.f32.mrf.mxu0
    %v336 = vadd.f32 0.0, %v335
    %337 = vmatprep.mubr.bf16.mxu0 0
    %338 = vmatmul.mubr.bf16.gmra.mxu0 %v157
    %v339 = vpop.f32.mrf.mxu0
    %v340 = vadd.f32 0.0, %v339
    %v341 = vpop.f32.mrf.mxu0
    %v342 = vadd.f32 0.0, %v341
    %v343 = vpop.f32.mrf.mxu0
    %v344 = vadd.f32 0.0, %v343
    %v345 = vpop.f32.mrf.mxu0
    %v346 = vadd.f32 0.0, %v345
    %347 = vmatprep.mubr.bf16.mxu0 0
    %348 = vmatmul.mubr.bf16.gmra.mxu0 %v158
    %v349 = vpop.f32.mrf.mxu0
    %v350 = vadd.f32 0.0, %v349
    %v351 = vpop.f32.mrf.mxu0
    %v352 = vadd.f32 0.0, %v351
    %v353 = vpop.f32.mrf.mxu0
    %v354 = vadd.f32 0.0, %v353
    %v355 = vpop.f32.mrf.mxu0
    %v356 = vadd.f32 0.0, %v355
    %357 = vmatprep.mubr.bf16.mxu0 0
    %358 = vmatmul.mubr.bf16.gmra.mxu0 %v159
    %v359 = vpop.f32.mrf.mxu0
    %v360 = vadd.f32 0.0, %v359
    %v361 = vpop.f32.mrf.mxu0
    %v362 = vadd.f32 0.0, %v361
    %v363 = vpop.f32.mrf.mxu0
    %v364 = vadd.f32 0.0, %v363
    %v365 = vpop.f32.mrf.mxu0
    %v366 = vadd.f32 0.0, %v365
    %367 = vmatprep.mubr.bf16.mxu0 0
    %368 = vmatmul.mubr.bf16.gmra.mxu0 %v160
    %v369 = vpop.f32.mrf.mxu0
    %v370 = vadd.f32 0.0, %v369
    %v371 = vpop.f32.mrf.mxu0
    %v372 = vadd.f32 0.0, %v371
    %v373 = vpop.f32.mrf.mxu0
    %v374 = vadd.f32 0.0, %v373
    %v375 = vpop.f32.mrf.mxu0
    %v376 = vadd.f32 0.0, %v375
    %377 = vmatprep.mubr.bf16.mxu0 0
    %378 = vmatmul.mubr.bf16.gmra.mxu0 %v161
    %v379 = vpop.f32.mrf.mxu0
    %v380 = vadd.f32 0.0, %v379
    %v381 = vpop.f32.mrf.mxu0
    %v382 = vadd.f32 0.0, %v381
    %v383 = vpop.f32.mrf.mxu0
    %v384 = vadd.f32 0.0, %v383
    %v385 = vpop.f32.mrf.mxu0
    %v386 = vadd.f32 0.0, %v385
    %387 = vmatprep.mubr.bf16.mxu0 0
    %388 = vmatmul.mubr.bf16.gmra.mxu0 %v162
    %v389 = vpop.f32.mrf.mxu0
    %v390 = vadd.f32 0.0, %v389
    %v391 = vpop.f32.mrf.mxu0
    %v392 = vadd.f32 0.0, %v391
    %v393 = vpop.f32.mrf.mxu0
    %v394 = vadd.f32 0.0, %v393
    %v395 = vpop.f32.mrf.mxu0
    %v396 = vadd.f32 0.0, %v395
    %397 = vmatprep.mubr.bf16.mxu0 0
    %398 = vmatmul.mubr.bf16.gmra.mxu0 %v163
    %v399 = vpop.f32.mrf.mxu0
    %v400 = vadd.f32 0.0, %v399
    %v401 = vpop.f32.mrf.mxu0
    %v402 = vadd.f32 0.0, %v401
    %v403 = vpop.f32.mrf.mxu0
    %v404 = vadd.f32 0.0, %v403
    %v405 = vpop.f32.mrf.mxu0
    %v406 = vadd.f32 0.0, %v405
    %407 = vmatprep.mubr.bf16.mxu0 0
    %408 = vmatmul.mubr.bf16.gmra.mxu0 %v164
    %v409 = vpop.f32.mrf.mxu0
    %v410 = vadd.f32 0.0, %v409
    %v411 = vpop.f32.mrf.mxu0
    %v412 = vadd.f32 0.0, %v411
    %v413 = vpop.f32.mrf.mxu0
    %v414 = vadd.f32 0.0, %v413
    %v415 = vpop.f32.mrf.mxu0
    %v416 = vadd.f32 0.0, %v415
    %417 = vmatprep.mubr.bf16.mxu0 0
    %418 = vmatmul.mubr.bf16.gmra.mxu0 %v165
    %v419 = vpop.f32.mrf.mxu0
    %v420 = vadd.f32 0.0, %v419
    %v421 = vpop.f32.mrf.mxu0
    %v422 = vadd.f32 0.0, %v421
    %v423 = vpop.f32.mrf.mxu0
    %v424 = vadd.f32 0.0, %v423
    %v425 = vpop.f32.mrf.mxu0
    %v426 = vadd.f32 0.0, %v425
    %427 = vmatprep.mubr.bf16.mxu0 0
    %428 = vmatmul.mubr.bf16.gmra.mxu0 %v166
    %v429 = vpop.f32.mrf.mxu0
    %v430 = vadd.f32 0.0, %v429
    %v431 = vpop.f32.mrf.mxu0
    %v432 = vadd.f32 0.0, %v431
    %v433 = vpop.f32.mrf.mxu0
    %v434 = vadd.f32 0.0, %v433
    %v435 = vpop.f32.mrf.mxu0
    %v436 = vadd.f32 0.0, %v435
    %437 = vmatprep.mubr.bf16.mxu0 0
    %438 = vmatmul.mubr.bf16.gmra.mxu0 %v167
    %v439 = vpop.f32.mrf.mxu0
    %v440 = vadd.f32 0.0, %v439
    %v441 = vpop.f32.mrf.mxu0
    %v442 = vadd.f32 0.0, %v441
    %v443 = vpop.f32.mrf.mxu0
    %v444 = vadd.f32 0.0, %v443
    %v445 = vpop.f32.mrf.mxu0
    %v446 = vadd.f32 0.0, %v445
    %447 = vmatprep.mubr.bf16.mxu0 0
    %448 = vmatmul.mubr.bf16.gmra.mxu0 %v168
    %v449 = vpop.f32.mrf.mxu0
    %v450 = vadd.f32 0.0, %v449
    %v451 = vpop.f32.mrf.mxu0
    %v452 = vadd.f32 0.0, %v451
    %v453 = vpop.f32.mrf.mxu0
    %v454 = vadd.f32 0.0, %v453
    %v455 = vpop.f32.mrf.mxu0
    %v456 = vadd.f32 0.0, %v455
    %457 = vdwg.mxu0
    %v458 = vpack.c.bf16 %v304, %v300
    %v459 = vpack.c.bf16 %v306, %v302
    %v460 = vpack.c.bf16 %v314, %v310
    %v461 = vpack.c.bf16 %v316, %v312
    %v462 = vpack.c.bf16 %v324, %v320
    %v463 = vpack.c.bf16 %v326, %v322
    %v464 = vpack.c.bf16 %v334, %v330
    %v465 = vpack.c.bf16 %v336, %v332
    %v466 = vpack.c.bf16 %v344, %v340
    %v467 = vpack.c.bf16 %v346, %v342
    %v468 = vpack.c.bf16 %v354, %v350
    %v469 = vpack.c.bf16 %v356, %v352
    %v470 = vpack.c.bf16 %v364, %v360
    %v471 = vpack.c.bf16 %v366, %v362
    %v472 = vpack.c.bf16 %v374, %v370
    %v473 = vpack.c.bf16 %v376, %v372
    %v474 = vpack.c.bf16 %v384, %v380
    %v475 = vpack.c.bf16 %v386, %v382
    %v476 = vpack.c.bf16 %v394, %v390
    %v477 = vpack.c.bf16 %v396, %v392
    %v478 = vpack.c.bf16 %v404, %v400
    %v479 = vpack.c.bf16 %v406, %v402
    %v480 = vpack.c.bf16 %v414, %v410
    %v481 = vpack.c.bf16 %v416, %v412
    %v482 = vpack.c.bf16 %v424, %v420
    %v483 = vpack.c.bf16 %v426, %v422
    %v484 = vpack.c.bf16 %v434, %v430
    %v485 = vpack.c.bf16 %v436, %v432
    %v486 = vpack.c.bf16 %v444, %v440
    %v487 = vpack.c.bf16 %v446, %v442
    %v488 = vpack.c.bf16 %v454, %v450
    %v489 = vpack.c.bf16 %v456, %v452
    %v522 = vunpack.c.l.b16 %v458
    %v523 = vunpack.c.l.b16 %v459
    %v524 = vunpack.c.h.b16 %v458
    %v525 = vunpack.c.h.b16 %v459
    %v526 = vunpack.c.l.b16 %v460
    %v527 = vunpack.c.l.b16 %v461
    %v528 = vunpack.c.h.b16 %v460
    %v529 = vunpack.c.h.b16 %v461
    %v530 = vunpack.c.l.b16 %v462
    %v531 = vunpack.c.l.b16 %v463
    %v532 = vunpack.c.h.b16 %v462
    %v533 = vunpack.c.h.b16 %v463
    %v534 = vunpack.c.l.b16 %v464
    %v535 = vunpack.c.l.b16 %v465
    %v536 = vunpack.c.h.b16 %v464
    %v537 = vunpack.c.h.b16 %v465
    %v538 = vunpack.c.l.b16 %v466
    %v539 = vunpack.c.l.b16 %v467
    %v540 = vunpack.c.h.b16 %v466
    %v541 = vunpack.c.h.b16 %v467
    %v542 = vunpack.c.l.b16 %v468
    %v543 = vunpack.c.l.b16 %v469
    %v544 = vunpack.c.h.b16 %v468
    %v545 = vunpack.c.h.b16 %v469
    %v546 = vunpack.c.l.b16 %v470
    %v547 = vunpack.c.l.b16 %v471
    %v548 = vunpack.c.h.b16 %v470
    %v549 = vunpack.c.h.b16 %v471
    %v550 = vunpack.c.l.b16 %v472
    %v551 = vunpack.c.l.b16 %v473
    %v552 = vunpack.c.h.b16 %v472
    %v553 = vunpack.c.h.b16 %v473
    %v554 = vunpack.c.l.b16 %v474
    %v555 = vunpack.c.l.b16 %v475
    %v556 = vunpack.c.h.b16 %v474
    %v557 = vunpack.c.h.b16 %v475
    %v558 = vunpack.c.l.b16 %v476
    %v559 = vunpack.c.l.b16 %v477
    %v560 = vunpack.c.h.b16 %v476
    %v561 = vunpack.c.h.b16 %v477
    %v562 = vunpack.c.l.b16 %v478
    %v563 = vunpack.c.l.b16 %v479
    %v564 = vunpack.c.h.b16 %v478
    %v565 = vunpack.c.h.b16 %v479
    %v566 = vunpack.c.l.b16 %v480
    %v567 = vunpack.c.l.b16 %v481
    %v568 = vunpack.c.h.b16 %v480
    %v569 = vunpack.c.h.b16 %v481
    %v570 = vunpack.c.l.b16 %v482
    %v571 = vunpack.c.l.b16 %v483
    %v572 = vunpack.c.h.b16 %v482
    %v573 = vunpack.c.h.b16 %v483
    %v574 = vunpack.c.l.b16 %v484
    %v575 = vunpack.c.l.b16 %v485
    %v576 = vunpack.c.h.b16 %v484
    %v577 = vunpack.c.h.b16 %v485
    %v578 = vunpack.c.l.b16 %v486
    %v579 = vunpack.c.l.b16 %v487
    %v580 = vunpack.c.h.b16 %v486
    %v581 = vunpack.c.h.b16 %v487
    %v582 = vunpack.c.l.b16 %v488
    %v583 = vunpack.c.l.b16 %v489
    %v584 = vunpack.c.h.b16 %v488
    %v585 = vunpack.c.h.b16 %v489
    %v586 = vpack.c.b16 %v523, %v522
    %v587 = vpack.c.b16 %v525, %v524
    %v588 = vpack.c.b16 %v527, %v526
    %v589 = vpack.c.b16 %v529, %v528
    %v590 = vpack.c.b16 %v531, %v530
    %v591 = vpack.c.b16 %v533, %v532
    %v592 = vpack.c.b16 %v535, %v534
    %v593 = vpack.c.b16 %v537, %v536
    %v594 = vpack.c.b16 %v539, %v538
    %v595 = vpack.c.b16 %v541, %v540
    %v596 = vpack.c.b16 %v543, %v542
    %v597 = vpack.c.b16 %v545, %v544
    %v598 = vpack.c.b16 %v547, %v546
    %v599 = vpack.c.b16 %v549, %v548
    %v600 = vpack.c.b16 %v551, %v550
    %v601 = vpack.c.b16 %v553, %v552
    %v602 = vpack.c.b16 %v555, %v554
    %v603 = vpack.c.b16 %v557, %v556
    %v604 = vpack.c.b16 %v559, %v558
    %v605 = vpack.c.b16 %v561, %v560
    %v606 = vpack.c.b16 %v563, %v562
    %v607 = vpack.c.b16 %v565, %v564
    %v608 = vpack.c.b16 %v567, %v566
    %v609 = vpack.c.b16 %v569, %v568
    %v610 = vpack.c.b16 %v571, %v570
    %v611 = vpack.c.b16 %v573, %v572
    %v612 = vpack.c.b16 %v575, %v574
    %v613 = vpack.c.b16 %v577, %v576
    %v614 = vpack.c.b16 %v579, %v578
    %v615 = vpack.c.b16 %v581, %v580
    %v616 = vpack.c.b16 %v583, %v582
    %v617 = vpack.c.b16 %v585, %v584
    %650 = vst [vmem:[#allocation7] sm:$0xff] %v586
    %651 = vst [vmem:[#allocation7 + $0x8] sm:$0xff] %v587
    %652 = vst [vmem:[#allocation7 + $0x10] sm:$0xff] %v588
    %653 = vst [vmem:[#allocation7 + $0x18] sm:$0xff] %v589
    %654 = vst [vmem:[#allocation7 + $0x20] sm:$0xff] %v590
    %655 = vst [vmem:[#allocation7 + $0x28] sm:$0xff] %v591
    %656 = vst [vmem:[#allocation7 + $0x30] sm:$0xff] %v592
    %657 = vst [vmem:[#allocation7 + $0x38] sm:$0xff] %v593
    %658 = vst [vmem:[#allocation7 + $0x40] sm:$0xff] %v594
    %659 = vst [vmem:[#allocation7 + $0x48] sm:$0xff] %v595
    %660 = vst [vmem:[#allocation7 + $0x50] sm:$0xff] %v596
    %661 = vst [vmem:[#allocation7 + $0x58] sm:$0xff] %v597
    %662 = vst [vmem:[#allocation7 + $0x60] sm:$0xff] %v598
    %663 = vst [vmem:[#allocation7 + $0x68] sm:$0xff] %v599
    %664 = vst [vmem:[#allocation7 + $0x70] sm:$0xff] %v600
    %665 = vst [vmem:[#allocation7 + $0x78] sm:$0xff] %v601
    %666 = vst [vmem:[#allocation7 + $0x80] sm:$0xff] %v602
    %667 = vst [vmem:[#allocation7 + $0x88] sm:$0xff] %v603
    %668 = vst [vmem:[#allocation7 + $0x90] sm:$0xff] %v604
    %669 = vst [vmem:[#allocation7 + $0x98] sm:$0xff] %v605
    %670 = vst [vmem:[#allocation7 + $0xa0] sm:$0xff] %v606
    %671 = vst [vmem:[#allocation7 + $0xa8] sm:$0xff] %v607
    %672 = vst [vmem:[#allocation7 + $0xb0] sm:$0xff] %v608
    %673 = vst [vmem:[#allocation7 + $0xb8] sm:$0xff] %v609
    %674 = vst [vmem:[#allocation7 + $0xc0] sm:$0xff] %v610
    %675 = vst [vmem:[#allocation7 + $0xc8] sm:$0xff] %v611
    %676 = vst [vmem:[#allocation7 + $0xd0] sm:$0xff] %v612
    %677 = vst [vmem:[#allocation7 + $0xd8] sm:$0xff] %v613
    %678 = vst [vmem:[#allocation7 + $0xe0] sm:$0xff] %v614
    %679 = vst [vmem:[#allocation7 + $0xe8] sm:$0xff] %v615
    %680 = vst [vmem:[#allocation7 + $0xf0] sm:$0xff] %v616
    %681 = vst [vmem:[#allocation7 + $0xf8] sm:$0xff] %v617
    // Predicated region
    $region18: #{tpu_custom_call.1} parent=1 // pred_check
      _
    $region19: #{tpu_custom_call.1} parent=1 // pred_check_branch
      %683 = sbr.rel (0) target = $region21
    $region20: #{tpu_custom_call.1} parent=1 // pred_region
      %s685 = ssub.s32 4096, 4096
      %686 = vsyncadd [#allocation4], %s685
      %s687 = sshll.u32 [#allocation7], 4
      %s688 = int_to_ptr.vmem [resolvable:$true] %s687
      %693 = dma.vmem_to_hbm [thread:$0]  %s688, 4096, %s2, [#allocation4], 128, 128, 8
    $region21: #{tpu_custom_call.1} parent=1 // pred_fallthru
      _
    // Predicated region
    $region22: #{tpu_custom_call.1} parent=1 // pred_check
      _
    $region23: #{tpu_custom_call.1} parent=1 // pred_check_branch
      %695 = sbr.rel (0) target = $region25
    $region24: #{tpu_custom_call.1} parent=1 // pred_region
      %696 = dma.done [#allocation4], 4096
    $region25: #{tpu_custom_call.1} parent=1 // pred_fallthru
      _
    %697 = vsyncpa [#allocation3], 1
    %698 = vsyncpa [#allocation6], 1
    %699 = vsyncpa [#allocation4], 1

</llo_original>
